<compile_context>
chip_gen: v6e
topology: v6e:2x2x1
jax: 0.10.0
libtpu: 0.0.40
codegen_flags: <defaults>
</compile_context>

<pallas_src>
import functools

import jax
import jax.numpy as jnp
from jax.experimental import pallas as pl
from jax.experimental.pallas import tpu as pltpu


def _round_up(n, m):
    return ((n + m - 1) // m) * m


def _vmem_capacity_bytes():
    try:
        return int(pltpu.get_tpu_info().vmem_capacity_bytes)
    except Exception:
        return 64 * 1024 * 1024  # conservative fallback = v7x per-TC VMEM


def _generator_kernel(x_ref, w1_ref, b1_ref, w2_ref, b2_ref, o_ref,
                      *, compute_dtype):
    cd = compute_dtype
    # encoder: cast to bf16 at the VMEM tile (free VPU filler while mem-bound),
    # matmul on the MXU with f32 accumulation, bias + ReLU on the VPU in f32.
    h = jnp.dot(x_ref[...].astype(cd), w1_ref[...].astype(cd),
                preferred_element_type=jnp.float32)
    h = jnp.maximum(h + b1_ref[...], 0.0)
    # decoder: MXU matmul with bf16 LHS (documented trade-off: ~3e-2 abs error
    # vs an f32 reference, fine for a GAN generator; keeping h in f32 would
    # cost ~3x MXU passes), bias on the VPU, tanh on the EUP, all in f32.
    y = jnp.dot(h.astype(cd), w2_ref[...].astype(cd),
                preferred_element_type=jnp.float32)
    o_ref[...] = jnp.tanh(y + b2_ref[...]).astype(o_ref.dtype)


def generator_forward(x, w1, b1, w2, b2, *, block_b=None,
                      compute_dtype=jnp.bfloat16):
    """y = tanh(relu(x @ w1 + b1) @ w2 + b2), fused on TPU.

    x:  (B, in_dim)        w1: (in_dim, hidden)   b1: (1, hidden) or (hidden,)
    w2: (hidden, in_dim)   b2: (1, in_dim) or (in_dim,)
    """
    B, in_dim = x.shape
    hidden = w1.shape[1]

    # Biases as (1, F) f32 rows (tiny; everything else passes through unpadded).
    b1 = b1.reshape(1, hidden).astype(jnp.float32)
    b2 = b2.reshape(1, in_dim).astype(jnp.float32)

    vmem_cap = _vmem_capacity_bytes()
    if block_b is None:
        # 128-MiB VMEM chips (v5e/v6e) ride the HBM roofline better with
        # bigger batch tiles; cap lower on v7x (64 MiB, 2 TCs).
        block_b = 512 if vmem_cap >= 96 * 1024 * 1024 else 256
    # Guarantee >= 2 grid steps (both v7x TensorCores get work, pipeline has
    # overlap); keep the tile a multiple of 16 for clean bf16 sublane packing.
    block_b = max(16, min(block_b, _round_up(pl.cdiv(B, 2), 16)))
    grid = (pl.cdiv(B, block_b),)

    cd_bytes = jnp.dtype(compute_dtype).itemsize
    f32b = 4
    vmem_estimate = (
        2 * block_b * in_dim * x.dtype.itemsize        # x tile (double-buffered)
        + in_dim * hidden * w1.dtype.itemsize          # w1 (single-buffered)
        + hidden * in_dim * w2.dtype.itemsize          # w2 (single-buffered)
        + 8 * (hidden + in_dim) * f32b                 # biases, 8-sublane padded
        + 2 * block_b * in_dim * x.dtype.itemsize      # output tile (x2 buffers)
        + block_b * hidden * f32b                      # h intermediate (f32)
        + block_b * in_dim * f32b                      # y intermediate (f32)
        + block_b * (in_dim + hidden) * cd_bytes       # bf16 temps of x, h
    )
    vmem_limit = int(max(2 * vmem_estimate, 8 * 1024 * 1024))
    vmem_limit = min(vmem_limit, int(0.85 * vmem_cap))

    def param_spec(shape):
        # Grid-invariant: DMA'd once, so a single buffer is enough.
        return pl.BlockSpec(shape, lambda i: (0, 0),
                            pipeline_mode=pl.Buffered(1))

    cost = pl.CostEstimate(
        flops=4 * B * in_dim * hidden,          # two (B,in)x(in,hid)-class matmuls
        transcendentals=B * in_dim,             # tanh on the output tile
        bytes_accessed=(2 * B * in_dim * x.dtype.itemsize
                        + in_dim * hidden * w1.dtype.itemsize
                        + hidden * in_dim * w2.dtype.itemsize
                        + (hidden + in_dim) * f32b),
    )

    out = pl.pallas_call(
        functools.partial(_generator_kernel, compute_dtype=compute_dtype),
        out_shape=jax.ShapeDtypeStruct((B, in_dim), x.dtype),
        grid_spec=pltpu.PrefetchScalarGridSpec(
            num_scalar_prefetch=0,
            grid=grid,
            in_specs=[
                pl.BlockSpec((block_b, in_dim), lambda i: (i, 0)),  # x batch tile
                param_spec((in_dim, hidden)),                       # w1
                param_spec((1, hidden)),                            # b1
                param_spec((hidden, in_dim)),                       # w2
                param_spec((1, in_dim)),                            # b2
            ],
            out_specs=pl.BlockSpec((block_b, in_dim), lambda i: (i, 0)),
        ),
        compiler_params=pltpu.CompilerParams(
            dimension_semantics=("parallel",),   # batch axis -> both TCs on v7x
            vmem_limit_bytes=vmem_limit,
        ),
        cost_estimate=cost,
    )(x, w1, b1, w2, b2)

    return out


def reference_forward(x, w1, b1, w2, b2):
    h = jnp.maximum(x @ w1 + b1.reshape(1, -1), 0.0)
    return jnp.tanh(h @ w2 + b2.reshape(1, -1))


if __name__ == "__main__":
    key = jax.random.PRNGKey(0)
    k_x, k_w1, k_b1, k_w2, k_b2 = jax.random.split(key, 5)

    batch, in_dim, hidden = 256, 64, 32

    x = jax.random.normal(k_x, (batch, in_dim), dtype=jnp.float32)
    w1 = jax.random.normal(k_w1, (in_dim, hidden), dtype=jnp.float32) * (1.0 / jnp.sqrt(in_dim))
    b1 = jax.random.normal(k_b1, (1, hidden), dtype=jnp.float32) * 0.01
    w2 = jax.random.normal(k_w2, (hidden, in_dim), dtype=jnp.float32) * (1.0 / jnp.sqrt(hidden))
    b2 = jax.random.normal(k_b2, (1, in_dim), dtype=jnp.float32) * 0.01

    # Default block_b is clamped to round_up(cdiv(256, 2), 16) = 128 -> grid=(2,):
    # both v7x TensorCores get work even at this small demo size.
    out = generator_forward(x, w1, b1, w2, b2)
    out = jax.block_until_ready(out)

    ref = reference_forward(x, w1, b1, w2, b2)
    assert out.shape == (batch, in_dim)
    # bf16 MXU inputs with f32 accumulation -> loosened tolerance vs f32 ref.
    assert jnp.allclose(out, ref, atol=3e-2, rtol=3e-2), "mismatch vs reference"

    print("KERNEL_OK")
</pallas_src>

<mosaic_0001>
module attributes {stable_mosaic.version = 11 : i64} {
  func.func @_generator_kernel(%arg0: i32, %arg1: memref<128x64xf32, #tpu.memory_space<vmem>>, %arg2: memref<64x32xf32, #tpu.memory_space<vmem>>, %arg3: memref<1x32xf32, #tpu.memory_space<vmem>>, %arg4: memref<32x64xf32, #tpu.memory_space<vmem>>, %arg5: memref<1x64xf32, #tpu.memory_space<vmem>>, %arg6: memref<128x64xf32, #tpu.memory_space<vmem>>) attributes {dimension_semantics = [#tpu.dimension_semantics<parallel>], iteration_bounds = array<i64: 2>, scalar_prefetch = 0 : i64, scratch_operands = 0 : i64, tpu.core_type = #tpu.core_type<tc>, window_params = [{transform_indices = @transform_0, window_bounds = array<i64: 128, 64>}, {pipeline_mode = #tpu.pipeline_mode<synchronous>, transform_indices = @transform_1, window_bounds = array<i64: 64, 32>}, {pipeline_mode = #tpu.pipeline_mode<synchronous>, transform_indices = @transform_2, window_bounds = array<i64: 1, 32>}, {pipeline_mode = #tpu.pipeline_mode<synchronous>, transform_indices = @transform_3, window_bounds = array<i64: 32, 64>}, {pipeline_mode = #tpu.pipeline_mode<synchronous>, transform_indices = @transform_4, window_bounds = array<i64: 1, 64>}, {transform_indices = @transform_5, window_bounds = array<i64: 128, 64>}]} {
    %c0 = arith.constant 0 : index
    %c0_0 = arith.constant 0 : index
    %0 = vector.load %arg1[%c0, %c0_0] : memref<128x64xf32, #tpu.memory_space<vmem>>, vector<128x64xf32>
    %1 = arith.truncf %0 : vector<128x64xf32> to vector<128x64xbf16>
    %c0_1 = arith.constant 0 : index
    %c0_2 = arith.constant 0 : index
    %2 = vector.load %arg2[%c0_1, %c0_2] : memref<64x32xf32, #tpu.memory_space<vmem>>, vector<64x32xf32>
    %3 = arith.truncf %2 : vector<64x32xf32> to vector<64x32xbf16>
    %cst = arith.constant dense<0.000000e+00> : vector<128x32xf32>
    %4 = tpu.matmul %1, %3, %cst {dimension_numbers = #tpu.dot_dimension_numbers<[1], [0], [0], [1], [0, 0, 1, 1], [], []>} : vector<128x64xbf16>, vector<64x32xbf16>, vector<128x32xf32> -> vector<128x32xf32>
    %c0_3 = arith.constant 0 : index
    %c0_4 = arith.constant 0 : index
    %5 = vector.load %arg3[%c0_3, %c0_4] : memref<1x32xf32, #tpu.memory_space<vmem>>, vector<1x32xf32>
    %6 = vector.broadcast %5 : vector<1x32xf32> to vector<128x32xf32>
    %7 = arith.addf %4, %6 : vector<128x32xf32>
    %cst_5 = arith.constant 0.000000e+00 : f32
    %8 = vector.broadcast %cst_5 : f32 to vector<128x32xf32>
    %9 = arith.maximumf %7, %8 : vector<128x32xf32>
    %10 = arith.truncf %9 : vector<128x32xf32> to vector<128x32xbf16>
    %c0_6 = arith.constant 0 : index
    %c0_7 = arith.constant 0 : index
    %11 = vector.load %arg4[%c0_6, %c0_7] : memref<32x64xf32, #tpu.memory_space<vmem>>, vector<32x64xf32>
    %12 = arith.truncf %11 : vector<32x64xf32> to vector<32x64xbf16>
    %cst_8 = arith.constant dense<0.000000e+00> : vector<128x64xf32>
    %13 = tpu.matmul %10, %12, %cst_8 {dimension_numbers = #tpu.dot_dimension_numbers<[1], [0], [0], [1], [0, 0, 1, 1], [], []>} : vector<128x32xbf16>, vector<32x64xbf16>, vector<128x64xf32> -> vector<128x64xf32>
    %c0_9 = arith.constant 0 : index
    %c0_10 = arith.constant 0 : index
    %14 = vector.load %arg5[%c0_9, %c0_10] : memref<1x64xf32, #tpu.memory_space<vmem>>, vector<1x64xf32>
    %15 = vector.broadcast %14 : vector<1x64xf32> to vector<128x64xf32>
    %16 = arith.addf %13, %15 : vector<128x64xf32>
    %17 = math.tanh %16 : vector<128x64xf32>
    %c0_11 = arith.constant 0 : index
    %c0_12 = arith.constant 0 : index
    %18 = vector.load %arg6[%c0_11, %c0_12] : memref<128x64xf32, #tpu.memory_space<vmem>>, vector<128x64xf32>
    tpu.vector_store %arg6[%c0_11, %c0_12], %17 {strides = array<i32>} : memref<128x64xf32, #tpu.memory_space<vmem>>, vector<128x64xf32>,
    return
  }
  func.func @transform_0(%arg0: i32) -> (i32, i32) {
    %c0_i32 = arith.constant 0 : i32
    %c0_i32_0 = arith.constant 0 : i32
    return %arg0, %c0_i32 : i32, i32
  }
  func.func @transform_1(%arg0: i32) -> (i32, i32) {
    %c0_i32 = arith.constant 0 : i32
    %c0_i32_0 = arith.constant 0 : i32
    %c0_i32_1 = arith.constant 0 : i32
    return %c0_i32, %c0_i32_0 : i32, i32
  }
  func.func @transform_2(%arg0: i32) -> (i32, i32) {
    %c0_i32 = arith.constant 0 : i32
    %c0_i32_0 = arith.constant 0 : i32
    %c0_i32_1 = arith.constant 0 : i32
    return %c0_i32, %c0_i32_0 : i32, i32
  }
  func.func @transform_3(%arg0: i32) -> (i32, i32) {
    %c0_i32 = arith.constant 0 : i32
    %c0_i32_0 = arith.constant 0 : i32
    %c0_i32_1 = arith.constant 0 : i32
    return %c0_i32, %c0_i32_0 : i32, i32
  }
  func.func @transform_4(%arg0: i32) -> (i32, i32) {
    %c0_i32 = arith.constant 0 : i32
    %c0_i32_0 = arith.constant 0 : i32
    %c0_i32_1 = arith.constant 0 : i32
    return %c0_i32, %c0_i32_0 : i32, i32
  }
  func.func @transform_5(%arg0: i32) -> (i32, i32) {
    %c0_i32 = arith.constant 0 : i32
    %c0_i32_0 = arith.constant 0 : i32
    return %arg0, %c0_i32 : i32, i32
  }
}

</mosaic_0001>

<llo_original>
// kernel: tpu_custom_call.1
$region0: #{tpu_custom_call.1}
  #allocation0 [shape = 'u32[]', space=smem, size = 0x4, offset = 0x4, fixed_abs, tag = 'smem constant byte address 0x4 - core index']
  #allocation1 [shape = 'u32[144,128]{1,0:T(1,128)}', space=vmem, size = 0x12000, scoped, tag = 'internal scratch']
  %s0 = inlined_call_operand.vmem [shape: f32[256,64], index: 0, kind: input, shape index: {}]
  %s1 = inlined_call_operand.vmem [shape: f32[64,32], index: 1, kind: input, shape index: {}]
  %s2 = inlined_call_operand.vmem [shape: f32[1,32], index: 2, kind: input, shape index: {}]
  %s3 = inlined_call_operand.vmem [shape: f32[32,64], index: 3, kind: input, shape index: {}]
  %s4 = inlined_call_operand.vmem [shape: f32[1,64], index: 4, kind: input, shape index: {}]
  %s5 = inlined_call_operand.vmem [shape: f32[256,64], index: 5, kind: output, shape index: {}]
  %s6 = sld [smem:[#allocation0]]
  $region53: #{tpu_custom_call.1} parent=0
    _
  %s8 = ssub.s32 1, %s6
  %s9 = scalar_select 0, %s8, %s6
  loop: start=0, step=1, limit=4
  $region2: #{tpu_custom_call.1} parent=0 // loop_pre_header
    _
  $region3: #{tpu_custom_call.1} parent=0 // loop_header
    %s11 = sphi 0, %s15
    %p12 = scmp.ge.s32.totalorder %s11, 4
    %s21 = sphi 0, %s23
    %s24 = sphi 0, %s21
    %s25 = sphi 0, %s24
    %s41 = sphi 0, %s25
    %s45 = sphi 0, %s45
    %s47 = sphi 0, %s45
    %s48 = sphi 0, %s47
    %s62 = sphi 0, %s48
    %s66 = sphi 0, %s66
    %s68 = sphi 0, %s66
    %s69 = sphi 0, %s68
    %s83 = sphi 0, %s69
    %s87 = sphi 0, %s87
    %s89 = sphi 0, %s87
    %s90 = sphi 0, %s89
    %s104 = sphi 0, %s90
    %s108 = sphi 0, %s108
    %s110 = sphi 0, %s108
    %s111 = sphi 0, %s110
    %s125 = sphi 0, %s111
    %s131 = sphi 0, %s133
    %s134 = sphi 0, %s131
    %s135 = sphi 0, %s134
    %s151 = sphi 0, %s135
  $region4: #{tpu_custom_call.1} parent=0 // loop_header_branch
    %14 = sbr.rel (%p12) target = $region8
  $region5: #{tpu_custom_call.1} parent=0 // loop_body
    %s16 = ssub.s32 %s11, 1
    %s17 = ssub.s32 %s11, 2
    %s18 = sadd.s32 %s11, 1
    %s19 = ssub.s32 %s11, %s18
    %p20 = scmp.eq.s32.totalorder %s19, 0
    %s22 = sadd.s32 %s21, 1
    %s23 = scalar_select %p20, %s21, %s22
    %p26 = pneg %p20
    %p27 = scmp.eq.s32.totalorder %s11, 1
    %p28 = por %p26, %p27
    %p29 = scmp.ne.s32.totalorder %s21, %s24
    %p30 = scmp.eq.s32.totalorder %s11, 0
    %p31 = por %p29, %p30
    %p32 = scmp.ne.s32.totalorder %s21, %s24
    %p33 = scmp.eq.s32.totalorder %s16, 1
    %p34 = por %p32, %p33
    %p35 = scmp.ne.s32.totalorder %s24, %s25
    %p36 = scmp.eq.s32.totalorder %s16, 0
    %p37 = por %p35, %p36
    %p38 = scmp.ne.s32.totalorder %s24, %s25
    %p39 = scmp.eq.s32.totalorder %s17, 1
    %p40 = por %p38, %p39
    %p42 = scmp.ne.s32.totalorder %s25, %s41
    %p43 = scmp.eq.s32.totalorder %s17, 0
    %p44 = por %p42, %p43
    %s46 = sadd.s32 %s45, 1
    %p49 = scmp.eq.s32.totalorder %s11, 1
    %p50 = scmp.ne.s32.totalorder %s45, %s47
    %p51 = scmp.eq.s32.totalorder %s11, 0
    %p52 = por %p50, %p51
    %p53 = scmp.ne.s32.totalorder %s45, %s47
    %p54 = scmp.eq.s32.totalorder %s16, 1
    %p55 = por %p53, %p54
    %p56 = scmp.ne.s32.totalorder %s47, %s48
    %p57 = scmp.eq.s32.totalorder %s16, 0
    %p58 = por %p56, %p57
    %p59 = scmp.ne.s32.totalorder %s47, %s48
    %p60 = scmp.eq.s32.totalorder %s17, 1
    %p61 = por %p59, %p60
    %p63 = scmp.ne.s32.totalorder %s48, %s62
    %p64 = scmp.eq.s32.totalorder %s17, 0
    %p65 = por %p63, %p64
    %s67 = sadd.s32 %s66, 1
    %p70 = scmp.eq.s32.totalorder %s11, 1
    %p71 = scmp.ne.s32.totalorder %s66, %s68
    %p72 = scmp.eq.s32.totalorder %s11, 0
    %p73 = por %p71, %p72
    %p74 = scmp.ne.s32.totalorder %s66, %s68
    %p75 = scmp.eq.s32.totalorder %s16, 1
    %p76 = por %p74, %p75
    %p77 = scmp.ne.s32.totalorder %s68, %s69
    %p78 = scmp.eq.s32.totalorder %s16, 0
    %p79 = por %p77, %p78
    %p80 = scmp.ne.s32.totalorder %s68, %s69
    %p81 = scmp.eq.s32.totalorder %s17, 1
    %p82 = por %p80, %p81
    %p84 = scmp.ne.s32.totalorder %s69, %s83
    %p85 = scmp.eq.s32.totalorder %s17, 0
    %p86 = por %p84, %p85
    %s88 = sadd.s32 %s87, 1
    %p91 = scmp.eq.s32.totalorder %s11, 1
    %p92 = scmp.ne.s32.totalorder %s87, %s89
    %p93 = scmp.eq.s32.totalorder %s11, 0
    %p94 = por %p92, %p93
    %p95 = scmp.ne.s32.totalorder %s87, %s89
    %p96 = scmp.eq.s32.totalorder %s16, 1
    %p97 = por %p95, %p96
    %p98 = scmp.ne.s32.totalorder %s89, %s90
    %p99 = scmp.eq.s32.totalorder %s16, 0
    %p100 = por %p98, %p99
    %p101 = scmp.ne.s32.totalorder %s89, %s90
    %p102 = scmp.eq.s32.totalorder %s17, 1
    %p103 = por %p101, %p102
    %p105 = scmp.ne.s32.totalorder %s90, %s104
    %p106 = scmp.eq.s32.totalorder %s17, 0
    %p107 = por %p105, %p106
    %s109 = sadd.s32 %s108, 1
    %p112 = scmp.eq.s32.totalorder %s11, 1
    %p113 = scmp.ne.s32.totalorder %s108, %s110
    %p114 = scmp.eq.s32.totalorder %s11, 0
    %p115 = por %p113, %p114
    %p116 = scmp.ne.s32.totalorder %s108, %s110
    %p117 = scmp.eq.s32.totalorder %s16, 1
    %p118 = por %p116, %p117
    %p119 = scmp.ne.s32.totalorder %s110, %s111
    %p120 = scmp.eq.s32.totalorder %s16, 0
    %p121 = por %p119, %p120
    %p122 = scmp.ne.s32.totalorder %s110, %s111
    %p123 = scmp.eq.s32.totalorder %s17, 1
    %p124 = por %p122, %p123
    %p126 = scmp.ne.s32.totalorder %s111, %s125
    %p127 = scmp.eq.s32.totalorder %s17, 0
    %p128 = por %p126, %p127
    %s129 = ssub.s32 %s11, %s18
    %p130 = scmp.eq.s32.totalorder %s129, 0
    %s132 = sadd.s32 %s131, 1
    %s133 = scalar_select %p130, %s131, %s132
    %p136 = pneg %p130
    %p137 = scmp.eq.s32.totalorder %s11, 1
    %p138 = por %p136, %p137
    %p139 = scmp.ne.s32.totalorder %s131, %s134
    %p140 = scmp.eq.s32.totalorder %s11, 0
    %p141 = por %p139, %p140
    %p142 = scmp.ne.s32.totalorder %s131, %s134
    %p143 = scmp.eq.s32.totalorder %s16, 1
    %p144 = por %p142, %p143
    %p145 = scmp.ne.s32.totalorder %s134, %s135
    %p146 = scmp.eq.s32.totalorder %s16, 0
    %p147 = por %p145, %p146
    %p148 = scmp.ne.s32.totalorder %s134, %s135
    %p149 = scmp.eq.s32.totalorder %s17, 1
    %p150 = por %p148, %p149
    %p152 = scmp.ne.s32.totalorder %s135, %s151
    %p153 = scmp.eq.s32.totalorder %s17, 0
    %p154 = por %p152, %p153
    %p155 = scmp.le.s32.totalorder 1, %s11
    %p156 = scmp.lt.s32.totalorder %s11, 3
    %p157 = pnand %p155, %p156
    %p158 = pneg %p157
    // Predicated region
    $region9: #{tpu_custom_call.1} parent=5 // pred_check
      _
    $region10: #{tpu_custom_call.1} parent=5 // pred_check_branch
      %160 = sbr.rel (%p157) target = $region12
    $region11: #{tpu_custom_call.1} parent=5 // pred_region
      %s161 = ssub.s32 %s11, 1
      // Predicated region
      $region13: #{tpu_custom_call.1} parent=11 // pred_check
        %p162 = pneg %p58
      $region14: #{tpu_custom_call.1} parent=11 // pred_check_branch
        %164 = sbr.rel (%p162) target = $region16
      $region15: #{tpu_custom_call.1} parent=11 // pred_region
        _
      $region16: #{tpu_custom_call.1} parent=11 // pred_fallthru
        _
      // Predicated region
      $region17: #{tpu_custom_call.1} parent=11 // pred_check
        %p165 = pneg %p79
      $region18: #{tpu_custom_call.1} parent=11 // pred_check_branch
        %167 = sbr.rel (%p165) target = $region20
      $region19: #{tpu_custom_call.1} parent=11 // pred_region
        _
      $region20: #{tpu_custom_call.1} parent=11 // pred_fallthru
        _
      // Predicated region
      $region21: #{tpu_custom_call.1} parent=11 // pred_check
        %p168 = pneg %p100
      $region22: #{tpu_custom_call.1} parent=11 // pred_check_branch
        %170 = sbr.rel (%p168) target = $region24
      $region23: #{tpu_custom_call.1} parent=11 // pred_region
        _
      $region24: #{tpu_custom_call.1} parent=11 // pred_fallthru
        _
      // Predicated region
      $region25: #{tpu_custom_call.1} parent=11 // pred_check
        %p171 = pneg %p121
      $region26: #{tpu_custom_call.1} parent=11 // pred_check_branch
        %173 = sbr.rel (%p171) target = $region28
      $region27: #{tpu_custom_call.1} parent=11 // pred_region
        _
      $region28: #{tpu_custom_call.1} parent=11 // pred_fallthru
        _
    $region12: #{tpu_custom_call.1} parent=5 // pred_fallthru
      _
    %p174 = scmp.lt.s32.totalorder %s11, 2
    // Predicated region
    $region29: #{tpu_custom_call.1} parent=5 // pred_check
      %p175 = pneg %p174
    $region30: #{tpu_custom_call.1} parent=5 // pred_check_branch
      %177 = sbr.rel (%p175) target = $region32
    $region31: #{tpu_custom_call.1} parent=5 // pred_region
      // Predicated region
      $region33: #{tpu_custom_call.1} parent=31 // pred_check
        %p178 = pneg %p31
      $region34: #{tpu_custom_call.1} parent=31 // pred_check_branch
        %180 = sbr.rel (%p178) target = $region36
      $region35: #{tpu_custom_call.1} parent=31 // pred_region
        %s181 = smul.u32 16, %s11
        %p182 = scmp.lt.s32.totalorder %s181, 31
        %s183 = scalar_select %p182, %s181, 31
        %s184 = smul.addr %s183, 8
        %s185 = scalar_lea.vmem %s0, %s184
        %s186 = smul.u32 16, %s11
      $region36: #{tpu_custom_call.1} parent=31 // pred_fallthru
        _
    $region32: #{tpu_custom_call.1} parent=5 // pred_fallthru
      _
    %p187 = scmp.le.s32.totalorder 1, %s11
    %p188 = scmp.lt.s32.totalorder %s11, 3
    %p189 = pnand %p187, %p188
    %p190 = pneg %p189
    // Predicated region
    $region37: #{tpu_custom_call.1} parent=5 // pred_check
      _
    $region38: #{tpu_custom_call.1} parent=5 // pred_check_branch
      %192 = sbr.rel (%p189) target = $region40
    $region39: #{tpu_custom_call.1} parent=5 // pred_region
      %s193 = ssub.s32 %s11, 1
      %s194 = smul.u32 16, %s16
      %p195 = scmp.lt.s32.totalorder %s194, 31
      %s196 = scalar_select %p195, %s194, 31
      %s197 = smul.addr %s196, 8
      %s198 = scalar_lea.vmem %s0, %s197
      %p199 = pneg %p37
      %p200 = pneg %p34
      %p201 = pneg %p58
      %p202 = pneg %p55
      %p203 = pneg %p79
      %p204 = pneg %p76
      %p205 = pneg %p100
      %p206 = pneg %p97
      %p207 = pneg %p121
      %p208 = pneg %p118
      %p209 = pneg %p147
      %p210 = pneg %p144
      %s211 = smul.u32 16, %s16
      %p212 = scmp.lt.s32.totalorder %s211, 31
      %s213 = scalar_select %p212, %s211, 31
      %s214 = smul.addr %s213, 8
      %s215 = scalar_lea.vmem %s5, %s214
      %s216 = smul.u32 16, %s16
      %p217 = scmp.lt.s32.totalorder %s216, 31
      %s218 = scalar_select %p217, %s216, 31
      %s219 = smul.addr %s218, 8
      %s220 = scalar_lea.vmem %s0, %s219
      %s221 = smul.u32 16, %s16
      %s222 = smul.u32 16, %s16
      %p223 = scmp.lt.s32.totalorder %s222, 31
      %s224 = scalar_select %p223, %s222, 31
      %s225 = smul.addr %s224, 8
      %s226 = scalar_lea.vmem %s5, %s225
      %s227 = smul.u32 16, %s16
      %v229 = vld [vmem:[%s220] sm:$0xff]
      %v230 = vld [vmem:[%s220 + $0x8] sm:$0xff]
      %v231 = vld [vmem:[%s220 + $0x10] sm:$0xff]
      %v232 = vld [vmem:[%s220 + $0x18] sm:$0xff]
      %v233 = vld [vmem:[%s220 + $0x20] sm:$0xff]
      %v234 = vld [vmem:[%s220 + $0x28] sm:$0xff]
      %v235 = vld [vmem:[%s220 + $0x30] sm:$0xff]
      %v236 = vld [vmem:[%s220 + $0x38] sm:$0xff]
      %v237 = vld [vmem:[%s220 + $0x40] sm:$0xff]
      %v238 = vld [vmem:[%s220 + $0x48] sm:$0xff]
      %v239 = vld [vmem:[%s220 + $0x50] sm:$0xff]
      %v240 = vld [vmem:[%s220 + $0x58] sm:$0xff]
      %v241 = vld [vmem:[%s220 + $0x60] sm:$0xff]
      %v242 = vld [vmem:[%s220 + $0x68] sm:$0xff]
      %v243 = vld [vmem:[%s220 + $0x70] sm:$0xff]
      %v244 = vld [vmem:[%s220 + $0x78] sm:$0xff]
      %v245 = vpack.c.bf16 %v230, %v229
      %v246 = vpack.c.bf16 %v232, %v231
      %v247 = vpack.c.bf16 %v234, %v233
      %v248 = vpack.c.bf16 %v236, %v235
      %v249 = vpack.c.bf16 %v238, %v237
      %v250 = vpack.c.bf16 %v240, %v239
      %v251 = vpack.c.bf16 %v242, %v241
      %v252 = vpack.c.bf16 %v244, %v243
      %v253 = vld [vmem:[%s1] sm:$0xff]
      %v254 = vld [vmem:[%s1 + $0x8] sm:$0xff]
      %v255 = vld [vmem:[%s1 + $0x10] sm:$0xff]
      %v256 = vld [vmem:[%s1 + $0x18] sm:$0xff]
      %v257 = vld [vmem:[%s1 + $0x20] sm:$0xff]
      %v258 = vld [vmem:[%s1 + $0x28] sm:$0xff]
      %v259 = vld [vmem:[%s1 + $0x30] sm:$0xff]
      %v260 = vld [vmem:[%s1 + $0x38] sm:$0xff]
      %v261 = vpack.c.bf16 %v254, %v253
      %v262 = vpack.c.bf16 %v256, %v255
      %v263 = vpack.c.bf16 %v258, %v257
      %v264 = vpack.c.bf16 %v260, %v259
      %v265 = vld [vmem:[%s2] sm:$0x1]
      %v267 = vlaneseq
      %v268 = vshrl.u32 %v267, 7
      %v269 = vsub.s32 0, %v268
      %v270 = vrot.slane %v265, %v269
      %vm272 = vcmask 523264
      %v274 = vsel %vm272, %v245, 0
      %v277 = vsel %vm272, %v246, 0
      %v280 = vsel %vm272, %v247, 0
      %v283 = vsel %vm272, %v248, 0
      %v286 = vsel %vm272, %v249, 0
      %v289 = vsel %vm272, %v250, 0
      %v292 = vsel %vm272, %v251, 0
      %v295 = vsel %vm272, %v252, 0
      %297 = vmatprep.subr.bf16.mxu0 0
      %298 = vmatpush1.bf16.msra.mxu0 0
      %299 = vmatprep.subr.bf16.mxu0 0
      %300 = vmatpush1.bf16.msra.mxu0 0
      %301 = vmatprep.subr.bf16.mxu0 0
      %302 = vmatpush1.bf16.msra.mxu0 0
      %303 = vmatprep.subr.bf16.mxu0 0
      %304 = vmatpush1.bf16.msra.mxu0 0
      %305 = vmatprep.subr.bf16.mxu0 0
      %306 = vmatpush1.bf16.msra.mxu0 %v264
      %307 = vmatprep.subr.bf16.mxu0 0
      %308 = vmatpush1.bf16.msra.mxu0 %v263
      %309 = vmatprep.subr.bf16.mxu0 0
      %310 = vmatpush1.bf16.msra.mxu0 %v262
      %311 = vmatprep.subr.bf16.mxu0 0
      %312 = vmatpush1.bf16.msra.mxu0 %v261
      %313 = vmatprep.subr.bf16.mxu0 0
      %314 = vmatpush2.bf16.msra.mxu0 0
      %315 = vmatprep.subr.bf16.mxu0 0
      %316 = vmatpush2.bf16.msra.mxu0 0
      %317 = vmatprep.subr.bf16.mxu0 0
      %318 = vmatpush2.bf16.msra.mxu0 0
      %319 = vmatprep.subr.bf16.mxu0 0
      %320 = vmatpush2.bf16.msra.mxu0 0
      %321 = vmatprep.subr.bf16.mxu0 0
      %322 = vmatpush2.bf16.msra.mxu0 0
      %323 = vmatprep.subr.bf16.mxu0 0
      %324 = vmatpush2.bf16.msra.mxu0 0
      %325 = vmatprep.subr.bf16.mxu0 0
      %326 = vmatpush2.bf16.msra.mxu0 0
      %327 = vmatprep.subr.bf16.mxu0 0
      %328 = vmatpush2.bf16.msra.mxu0 0
      %329 = vmatprep.mubr.bf16.mxu0 0
      %330 = vmatmul.mubr.bf16.gmra.mxu0 %v274
      %v331 = vpop.f32.mrf.mxu0
      %v332 = vadd.f32 %v270, %v331
      %v333 = vpop.f32.mrf.mxu0
      %v334 = vpop.f32.mrf.mxu0
      %v335 = vadd.f32 %v270, %v334
      %v336 = vpop.f32.mrf.mxu0
      %337 = vmatprep.mubr.bf16.mxu0 0
      %338 = vmatmul.mubr.bf16.gmra.mxu0 %v277
      %v339 = vpop.f32.mrf.mxu0
      %v340 = vadd.f32 %v270, %v339
      %v341 = vpop.f32.mrf.mxu0
      %v342 = vpop.f32.mrf.mxu0
      %v343 = vadd.f32 %v270, %v342
      %v344 = vpop.f32.mrf.mxu0
      %345 = vmatprep.mubr.bf16.mxu0 0
      %346 = vmatmul.mubr.bf16.gmra.mxu0 %v280
      %v347 = vpop.f32.mrf.mxu0
      %v348 = vadd.f32 %v270, %v347
      %v349 = vpop.f32.mrf.mxu0
      %v350 = vpop.f32.mrf.mxu0
      %v351 = vadd.f32 %v270, %v350
      %v352 = vpop.f32.mrf.mxu0
      %353 = vmatprep.mubr.bf16.mxu0 0
      %354 = vmatmul.mubr.bf16.gmra.mxu0 %v283
      %v355 = vpop.f32.mrf.mxu0
      %v356 = vadd.f32 %v270, %v355
      %v357 = vpop.f32.mrf.mxu0
      %v358 = vpop.f32.mrf.mxu0
      %v359 = vadd.f32 %v270, %v358
      %v360 = vpop.f32.mrf.mxu0
      %361 = vmatprep.mubr.bf16.mxu0 0
      %362 = vmatmul.mubr.bf16.gmra.mxu0 %v286
      %v363 = vpop.f32.mrf.mxu0
      %v364 = vadd.f32 %v270, %v363
      %v365 = vpop.f32.mrf.mxu0
      %v366 = vpop.f32.mrf.mxu0
      %v367 = vadd.f32 %v270, %v366
      %v368 = vpop.f32.mrf.mxu0
      %369 = vmatprep.mubr.bf16.mxu0 0
      %370 = vmatmul.mubr.bf16.gmra.mxu0 %v289
      %v371 = vpop.f32.mrf.mxu0
      %v372 = vadd.f32 %v270, %v371
      %v373 = vpop.f32.mrf.mxu0
      %v374 = vpop.f32.mrf.mxu0
      %v375 = vadd.f32 %v270, %v374
      %v376 = vpop.f32.mrf.mxu0
      %377 = vmatprep.mubr.bf16.mxu0 0
      %378 = vmatmul.mubr.bf16.gmra.mxu0 %v292
      %v379 = vpop.f32.mrf.mxu0
      %v380 = vadd.f32 %v270, %v379
      %v381 = vpop.f32.mrf.mxu0
      %v382 = vpop.f32.mrf.mxu0
      %v383 = vadd.f32 %v270, %v382
      %v384 = vpop.f32.mrf.mxu0
      %385 = vmatprep.mubr.bf16.mxu0 0
      %386 = vmatmul.mubr.bf16.gmra.mxu0 %v295
      %v387 = vpop.f32.mrf.mxu0
      %v388 = vadd.f32 %v270, %v387
      %v389 = vpop.f32.mrf.mxu0
      %v390 = vpop.f32.mrf.mxu0
      %v391 = vadd.f32 %v270, %v390
      %v392 = vpop.f32.mrf.mxu0
      %393 = vdwg.mxu0
      %v394 = vmax.f32 %v332, 0.0
      %v395 = vmax.f32 %v335, 0.0
      %v396 = vmax.f32 %v340, 0.0
      %v397 = vmax.f32 %v343, 0.0
      %v398 = vmax.f32 %v348, 0.0
      %v399 = vmax.f32 %v351, 0.0
      %v400 = vmax.f32 %v356, 0.0
      %v401 = vmax.f32 %v359, 0.0
      %v402 = vmax.f32 %v364, 0.0
      %v403 = vmax.f32 %v367, 0.0
      %v404 = vmax.f32 %v372, 0.0
      %v405 = vmax.f32 %v375, 0.0
      %v406 = vmax.f32 %v380, 0.0
      %v407 = vmax.f32 %v383, 0.0
      %v408 = vmax.f32 %v388, 0.0
      %v409 = vmax.f32 %v391, 0.0
      %v410 = vpack.c.bf16 %v395, %v394
      %v411 = vpack.c.bf16 %v397, %v396
      %v412 = vpack.c.bf16 %v399, %v398
      %v413 = vpack.c.bf16 %v401, %v400
      %v414 = vpack.c.bf16 %v403, %v402
      %v415 = vpack.c.bf16 %v405, %v404
      %v416 = vpack.c.bf16 %v407, %v406
      %v417 = vpack.c.bf16 %v409, %v408
      %v418 = vld [vmem:[%s3] sm:$0xff]
      %v419 = vld [vmem:[%s3 + $0x8] sm:$0xff]
      %v420 = vld [vmem:[%s3 + $0x10] sm:$0xff]
      %v421 = vld [vmem:[%s3 + $0x18] sm:$0xff]
      %v422 = vpack.c.bf16 %v419, %v418
      %v423 = vpack.c.bf16 %v421, %v420
      %v424 = vld [vmem:[%s4] sm:$0x1]
      %v426 = vlaneseq
      %v427 = vshrl.u32 %v426, 7
      %v428 = vsub.s32 0, %v427
      %v429 = vrot.slane %v424, %v428
      %vm431 = vcmask 261120
      %v433 = vsel %vm431, %v410, 0
      %v436 = vsel %vm431, %v411, 0
      %v439 = vsel %vm431, %v412, 0
      %v442 = vsel %vm431, %v413, 0
      %v445 = vsel %vm431, %v414, 0
      %v448 = vsel %vm431, %v415, 0
      %v451 = vsel %vm431, %v416, 0
      %v454 = vsel %vm431, %v417, 0
      %456 = vmatprep.subr.bf16.mxu0 0
      %457 = vmatpush1.bf16.msra.mxu0 0
      %458 = vmatprep.subr.bf16.mxu0 0
      %459 = vmatpush1.bf16.msra.mxu0 0
      %460 = vmatprep.subr.bf16.mxu0 0
      %461 = vmatpush1.bf16.msra.mxu0 0
      %462 = vmatprep.subr.bf16.mxu0 0
      %463 = vmatpush1.bf16.msra.mxu0 0
      %464 = vmatprep.subr.bf16.mxu0 0
      %465 = vmatpush1.bf16.msra.mxu0 0
      %466 = vmatprep.subr.bf16.mxu0 0
      %467 = vmatpush1.bf16.msra.mxu0 0
      %468 = vmatprep.subr.bf16.mxu0 0
      %469 = vmatpush1.bf16.msra.mxu0 %v423
      %470 = vmatprep.subr.bf16.mxu0 0
      %471 = vmatpush1.bf16.msra.mxu0 %v422
      %472 = vmatprep.subr.bf16.mxu0 0
      %473 = vmatpush2.bf16.msra.mxu0 0
      %474 = vmatprep.subr.bf16.mxu0 0
      %475 = vmatpush2.bf16.msra.mxu0 0
      %476 = vmatprep.subr.bf16.mxu0 0
      %477 = vmatpush2.bf16.msra.mxu0 0
      %478 = vmatprep.subr.bf16.mxu0 0
      %479 = vmatpush2.bf16.msra.mxu0 0
      %480 = vmatprep.subr.bf16.mxu0 0
      %481 = vmatpush2.bf16.msra.mxu0 0
      %482 = vmatprep.subr.bf16.mxu0 0
      %483 = vmatpush2.bf16.msra.mxu0 0
      %484 = vmatprep.subr.bf16.mxu0 0
      %485 = vmatpush2.bf16.msra.mxu0 0
      %486 = vmatprep.subr.bf16.mxu0 0
      %487 = vmatpush2.bf16.msra.mxu0 0
      %488 = vmatprep.mubr.bf16.mxu0 0
      %489 = vmatmul.mubr.bf16.gmra.mxu0 %v433
      %v490 = vpop.f32.mrf.mxu0
      %v491 = vadd.f32 %v429, %v490
      %v492 = vpop.f32.mrf.mxu0
      %v493 = vpop.f32.mrf.mxu0
      %v494 = vadd.f32 %v429, %v493
      %v495 = vpop.f32.mrf.mxu0
      %496 = vmatprep.mubr.bf16.mxu0 0
      %497 = vmatmul.mubr.bf16.gmra.mxu0 %v436
      %v498 = vpop.f32.mrf.mxu0
      %v499 = vadd.f32 %v429, %v498
      %v500 = vpop.f32.mrf.mxu0
      %v501 = vpop.f32.mrf.mxu0
      %v502 = vadd.f32 %v429, %v501
      %v503 = vpop.f32.mrf.mxu0
      %504 = vmatprep.mubr.bf16.mxu0 0
      %505 = vmatmul.mubr.bf16.gmra.mxu0 %v439
      %v506 = vpop.f32.mrf.mxu0
      %v507 = vadd.f32 %v429, %v506
      %v508 = vpop.f32.mrf.mxu0
      %v509 = vpop.f32.mrf.mxu0
      %v510 = vadd.f32 %v429, %v509
      %v511 = vpop.f32.mrf.mxu0
      %512 = vmatprep.mubr.bf16.mxu0 0
      %513 = vmatmul.mubr.bf16.gmra.mxu0 %v442
      %v514 = vpop.f32.mrf.mxu0
      %v515 = vadd.f32 %v429, %v514
      %v516 = vpop.f32.mrf.mxu0
      %v517 = vpop.f32.mrf.mxu0
      %v518 = vadd.f32 %v429, %v517
      %v519 = vpop.f32.mrf.mxu0
      %520 = vmatprep.mubr.bf16.mxu0 0
      %521 = vmatmul.mubr.bf16.gmra.mxu0 %v445
      %v522 = vpop.f32.mrf.mxu0
      %v523 = vadd.f32 %v429, %v522
      %v524 = vpop.f32.mrf.mxu0
      %v525 = vpop.f32.mrf.mxu0
      %v526 = vadd.f32 %v429, %v525
      %v527 = vpop.f32.mrf.mxu0
      %528 = vmatprep.mubr.bf16.mxu0 0
      %529 = vmatmul.mubr.bf16.gmra.mxu0 %v448
      %v530 = vpop.f32.mrf.mxu0
      %v531 = vadd.f32 %v429, %v530
      %v532 = vpop.f32.mrf.mxu0
      %v533 = vpop.f32.mrf.mxu0
      %v534 = vadd.f32 %v429, %v533
      %v535 = vpop.f32.mrf.mxu0
      %536 = vmatprep.mubr.bf16.mxu0 0
      %537 = vmatmul.mubr.bf16.gmra.mxu0 %v451
      %v538 = vpop.f32.mrf.mxu0
      %v539 = vadd.f32 %v429, %v538
      %v540 = vpop.f32.mrf.mxu0
      %v541 = vpop.f32.mrf.mxu0
      %v542 = vadd.f32 %v429, %v541
      %v543 = vpop.f32.mrf.mxu0
      %544 = vmatprep.mubr.bf16.mxu0 0
      %545 = vmatmul.mubr.bf16.gmra.mxu0 %v454
      %v546 = vpop.f32.mrf.mxu0
      %v547 = vadd.f32 %v429, %v546
      %v548 = vpop.f32.mrf.mxu0
      %v549 = vpop.f32.mrf.mxu0
      %v550 = vadd.f32 %v429, %v549
      %v551 = vpop.f32.mrf.mxu0
      %552 = vdwg.mxu0
      %v553 = vtanh.pop %v491
      %v554 = vtanh.pop %v494
      %v555 = vtanh.pop %v499
      %v556 = vtanh.pop %v502
      %v557 = vtanh.pop %v507
      %v558 = vtanh.pop %v510
      %v559 = vtanh.pop %v515
      %v560 = vtanh.pop %v518
      %v561 = vtanh.pop %v523
      %v562 = vtanh.pop %v526
      %v563 = vtanh.pop %v531
      %v564 = vtanh.pop %v534
      %v565 = vtanh.pop %v539
      %v566 = vtanh.pop %v542
      %v567 = vtanh.pop %v547
      %v568 = vtanh.pop %v550
      %569 = vst.msk [vmem:[%s226] sm:$0xff] %vm272, %v553
      %570 = vst.msk [vmem:[%s226 + $0x8] sm:$0xff] %vm272, %v554
      %571 = vst.msk [vmem:[%s226 + $0x10] sm:$0xff] %vm272, %v555
      %572 = vst.msk [vmem:[%s226 + $0x18] sm:$0xff] %vm272, %v556
      %573 = vst.msk [vmem:[%s226 + $0x20] sm:$0xff] %vm272, %v557
      %574 = vst.msk [vmem:[%s226 + $0x28] sm:$0xff] %vm272, %v558
      %575 = vst.msk [vmem:[%s226 + $0x30] sm:$0xff] %vm272, %v559
      %576 = vst.msk [vmem:[%s226 + $0x38] sm:$0xff] %vm272, %v560
      %577 = vst.msk [vmem:[%s226 + $0x40] sm:$0xff] %vm272, %v561
      %578 = vst.msk [vmem:[%s226 + $0x48] sm:$0xff] %vm272, %v562
      %579 = vst.msk [vmem:[%s226 + $0x50] sm:$0xff] %vm272, %v563
      %580 = vst.msk [vmem:[%s226 + $0x58] sm:$0xff] %vm272, %v564
      %581 = vst.msk [vmem:[%s226 + $0x60] sm:$0xff] %vm272, %v565
      %582 = vst.msk [vmem:[%s226 + $0x68] sm:$0xff] %vm272, %v566
      %583 = vst.msk [vmem:[%s226 + $0x70] sm:$0xff] %vm272, %v567
      %584 = vst.msk [vmem:[%s226 + $0x78] sm:$0xff] %vm272, %v568
      %s585 = smul.u32 16, %s16
      %p586 = scmp.lt.s32.totalorder %s585, 31
      %s587 = scalar_select %p586, %s585, 31
      %s588 = smul.addr %s587, 8
      %s589 = scalar_lea.vmem %s5, %s588
      // Predicated region
      $region41: #{tpu_custom_call.1} parent=39 // pred_check
        %p590 = pneg %p144
      $region42: #{tpu_custom_call.1} parent=39 // pred_check_branch
        %592 = sbr.rel (%p590) target = $region44
      $region43: #{tpu_custom_call.1} parent=39 // pred_region
        %s593 = smul.u32 16, %s16
      $region44: #{tpu_custom_call.1} parent=39 // pred_fallthru
        _
    $region40: #{tpu_custom_call.1} parent=5 // pred_fallthru
      _
    %p594 = scmp.le.s32.totalorder 2, %s11
    // Predicated region
    $region45: #{tpu_custom_call.1} parent=5 // pred_check
      %p595 = pneg %p594
    $region46: #{tpu_custom_call.1} parent=5 // pred_check_branch
      %597 = sbr.rel (%p595) target = $region48
    $region47: #{tpu_custom_call.1} parent=5 // pred_region
      %s598 = ssub.s32 %s11, 2
      // Predicated region
      $region49: #{tpu_custom_call.1} parent=47 // pred_check
        %p599 = pneg %p150
      $region50: #{tpu_custom_call.1} parent=47 // pred_check_branch
        %601 = sbr.rel (%p599) target = $region52
      $region51: #{tpu_custom_call.1} parent=47 // pred_region
        %s602 = smul.u32 16, %s17
        %p603 = scmp.lt.s32.totalorder %s602, 31
        %s604 = scalar_select %p603, %s602, 31
        %s605 = smul.addr %s604, 8
        %s606 = scalar_lea.vmem %s5, %s605
      $region52: #{tpu_custom_call.1} parent=47 // pred_fallthru
        _
    $region48: #{tpu_custom_call.1} parent=5 // pred_fallthru
      _
  $region6: #{tpu_custom_call.1} parent=0 // loop_footer
    %s15 = sadd.s32 1, %s11
  $region7: #{tpu_custom_call.1} parent=0 // loop_footer_branch
    %10 = sbr.rel target = $region3
  $region8: #{tpu_custom_call.1} parent=0 // loop_exit
    _

</llo_original>
